<compile_context>
chip_gen: v7x
topology: tpu7x:2x2x1
jax: 0.10.0
libtpu: 0.0.40
codegen_flags: <defaults>
</compile_context>

<pallas_src>
import functools
import math

import jax
import jax.numpy as jnp
from jax.experimental import pallas as pl
from jax.experimental.pallas import tpu as pltpu


def _round_up(x, mult):
    return ((x + mult - 1) // mult) * mult


def _amsoftmax_kernel(x_ref, w_ref, lb_ref, out_ref,
                      invx_scr, m_scr, l_scr, tgt_scr,
                      *, m, s, n_classes, tc):
    ci = pl.program_id(1)
    n_ct = pl.num_programs(1)

    # Init accumulators and the per-row inverse norm on the first class tile.
    @pl.when(ci == 0)
    def _():
        x0 = x_ref[...]
        ss = jnp.sum(x0 * x0, axis=1, keepdims=True)
        # clamp sum-of-squares at 1e-24 == clamping the norm at 1e-12 (torch semantics)
        invx_scr[...] = jax.lax.rsqrt(jnp.maximum(ss, 1e-24))
        m_scr[...] = jnp.full(m_scr.shape, -1e30, jnp.float32)
        l_scr[...] = jnp.zeros(l_scr.shape, jnp.float32)
        tgt_scr[...] = jnp.zeros(tgt_scr.shape, jnp.float32)

    x = x_ref[...]                                   # (TB, D)  f32
    w = w_ref[...]                                   # (D, TC)  f32
    lb = lb_ref[...]                                 # (TB, 1)  int32

    # Per-column inverse norm of this W tile.
    w_ss = jnp.sum(w * w, axis=0, keepdims=True)     # (1, TC)
    inv_w = jax.lax.rsqrt(jnp.maximum(w_ss, 1e-24))  # (1, TC)

    # Cosine similarities via MXU matmul + post-matmul scaling.
    costh = jnp.dot(x, w, preferred_element_type=jnp.float32)   # (TB, TC)
    costh = costh * invx_scr[...] * inv_w

    # Margin at the label column; mask padded (out-of-range) classes.
    col = ci * tc + jax.lax.broadcasted_iota(jnp.int32, costh.shape, 1)
    is_tgt = col == lb                                            # (TB, TC)
    logits = s * jnp.where(is_tgt, costh - m, costh)
    logits = jnp.where(col < n_classes, logits, -1e30)

    # Online logsumexp across class tiles.
    m_new = jnp.maximum(m_scr[...], jnp.max(logits, axis=1, keepdims=True))
    alpha = jnp.exp(m_scr[...] - m_new)
    l_scr[...] = alpha * l_scr[...] + jnp.sum(jnp.exp(logits - m_new),
                                              axis=1, keepdims=True)
    m_scr[...] = m_new
    tgt_scr[...] = tgt_scr[...] + jnp.sum(jnp.where(is_tgt, logits, 0.0),
                                          axis=1, keepdims=True)

    # Finalize: per-sample cross-entropy = logsumexp - target_logit.
    @pl.when(ci == n_ct - 1)
    def _():
        out_ref[...] = m_scr[...] + jnp.log(l_scr[...]) - tgt_scr[...]


def amsoftmax_loss(x, W, lb, *, m=0.3, s=15.0):
    """x: (B, in_feats) f32, W: (in_feats, n_classes) f32, lb: (B,) int -> scalar f32 loss."""
    B, D = x.shape
    Dw, C = W.shape
    assert D == Dw and lb.shape[0] == B

    # Batch tiling (parallel axis).
    tb = min(_round_up(B, 8), 128)
    B_pad = _round_up(B, tb)

    # Class tiling (arbitrary / reduction axis), lane-dense multiples of 128.
    tc = min(512, _round_up(C, 128))
    C_pad = _round_up(C, tc)

    x_p = jnp.pad(x.astype(jnp.float32), ((0, B_pad - B), (0, 0)))
    W_p = jnp.pad(W.astype(jnp.float32), ((0, 0), (0, C_pad - C)))
    lb_p = jnp.pad(lb.astype(jnp.int32), (0, B_pad - B)).reshape(B_pad, 1)

    kernel = functools.partial(_amsoftmax_kernel, m=float(m), s=float(s),
                               n_classes=C, tc=tc)

    grid = (B_pad // tb, C_pad // tc)

    per_sample = pl.pallas_call(
        kernel,
        out_shape=jax.ShapeDtypeStruct((B_pad, 1), jnp.float32),
        grid_spec=pltpu.PrefetchScalarGridSpec(
            num_scalar_prefetch=0,
            grid=grid,
            in_specs=[
                pl.BlockSpec((tb, D), lambda bi, ci: (bi, 0)),   # x rows
                pl.BlockSpec((D, tc), lambda bi, ci: (0, ci)),   # W class tile (streamed)
                pl.BlockSpec((tb, 1), lambda bi, ci: (bi, 0)),   # labels
            ],
            out_specs=pl.BlockSpec((tb, 1), lambda bi, ci: (bi, 0)),
            scratch_shapes=[
                pltpu.VMEM((tb, 1), jnp.float32),   # inv row norm
                pltpu.VMEM((tb, 1), jnp.float32),   # running max
                pltpu.VMEM((tb, 1), jnp.float32),   # running sum
                pltpu.VMEM((tb, 1), jnp.float32),   # target logit accumulator
            ],
        ),
        compiler_params=pltpu.CompilerParams(
            dimension_semantics=("parallel", "arbitrary"),
        ),
        cost_estimate=pl.CostEstimate(
            flops=2 * B_pad * D * C_pad,
            transcendentals=B_pad * C_pad,
            bytes_accessed=4 * (B_pad * D + D * C_pad + B_pad),
        ),
    )(x_p, W_p, lb_p)

    # Batch mean over the real (unpadded) samples.
    return jnp.mean(per_sample[:B, 0])


def _reference(x, W, lb, m=0.3, s=15.0):
    xn = x / jnp.maximum(jnp.linalg.norm(x, axis=1, keepdims=True), 1e-12)
    wn = W / jnp.maximum(jnp.linalg.norm(W, axis=0, keepdims=True), 1e-12)
    costh = xn @ wn
    onehot = jax.nn.one_hot(lb, W.shape[1], dtype=jnp.float32)
    logits = s * (costh - m * onehot)
    logp = jax.nn.log_softmax(logits, axis=-1)
    return -jnp.mean(jnp.sum(logp * onehot, axis=-1))


if __name__ == "__main__":
    B, in_feats, n_classes = 8, 32, 10
    m, s = 0.3, 15.0

    key = jax.random.PRNGKey(0)
    kx, kw, kl = jax.random.split(key, 3)

    x = jax.random.normal(kx, (B, in_feats), dtype=jnp.float32)
    # Xavier-normal init for W (gain=1): std = sqrt(2 / (fan_in + fan_out)).
    std = math.sqrt(2.0 / (in_feats + n_classes))
    W = std * jax.random.normal(kw, (in_feats, n_classes), dtype=jnp.float32)
    lb = jax.random.randint(kl, (B,), 0, n_classes, dtype=jnp.int32)

    loss = amsoftmax_loss(x, W, lb, m=m, s=s)
    jax.block_until_ready(loss)

    ref = _reference(x, W, lb, m=m, s=s)
    assert jnp.allclose(loss, ref, atol=1e-5, rtol=1e-5), (loss, ref)
    print("KERNEL_OK")
</pallas_src>

<mosaic_0001>
module attributes {stable_mosaic.version = 11 : i64} {
  func.func @_amsoftmax_kernel(%arg0: i32, %arg1: i32, %arg2: memref<8x32xf32, #tpu.memory_space<vmem>>, %arg3: memref<32x128xf32, #tpu.memory_space<vmem>>, %arg4: memref<8x1xi32, #tpu.memory_space<vmem>>, %arg5: memref<8x1xf32, #tpu.memory_space<vmem>>, %arg6: memref<8x1xf32, #tpu.memory_space<vmem>>, %arg7: memref<8x1xf32, #tpu.memory_space<vmem>>, %arg8: memref<8x1xf32, #tpu.memory_space<vmem>>, %arg9: memref<8x1xf32, #tpu.memory_space<vmem>>) attributes {dimension_semantics = [#tpu.dimension_semantics<parallel>, #tpu.dimension_semantics<arbitrary>], iteration_bounds = array<i64: 1, 1>, scalar_prefetch = 0 : i64, scratch_operands = 4 : i64, tpu.core_type = #tpu.core_type<tc>, window_params = [{transform_indices = @transform_0, window_bounds = array<i64: 8, 32>}, {transform_indices = @transform_1, window_bounds = array<i64: 32, 128>}, {transform_indices = @transform_2, window_bounds = array<i64: 8, 1>}, {transform_indices = @transform_3, window_bounds = array<i64: 8, 1>}]} {
    %c0_i32 = arith.constant 0 : i32
    %0 = arith.cmpi eq, %arg1, %c0_i32 : i32
    %1 = arith.extui %0 : i1 to i32
    %c0_i32_0 = arith.constant 0 : i32
    %2 = arith.cmpi ne, %1, %c0_i32_0 : i32
    scf.if %2 {
      %c0_33 = arith.constant 0 : index
      %c0_34 = arith.constant 0 : index
      %60 = vector.load %arg2[%c0_33, %c0_34] : memref<8x32xf32, #tpu.memory_space<vmem>>, vector<8x32xf32>
      %61 = arith.mulf %60, %60 : vector<8x32xf32>
      %cst_35 = arith.constant dense<0.000000e+00> : vector<8xf32>
      %62 = vector.multi_reduction <add>, %61, %cst_35 [1] : vector<8x32xf32> to vector<8xf32>
      %63 = vector.shape_cast %62 : vector<8xf32> to vector<8x1xf32>
      %cst_36 = arith.constant 1.000000e-24 : f32
      %64 = vector.broadcast %cst_36 : f32 to vector<8x1xf32>
      %65 = arith.maximumf %63, %64 : vector<8x1xf32>
      %66 = math.rsqrt %65 : vector<8x1xf32>
      %c0_37 = arith.constant 0 : index
      %c0_38 = arith.constant 0 : index
      %67 = vector.load %arg6[%c0_37, %c0_38] : memref<8x1xf32, #tpu.memory_space<vmem>>, vector<8x1xf32>
      tpu.vector_store %arg6[%c0_37, %c0_38], %66 {strides = array<i32>} : memref<8x1xf32, #tpu.memory_space<vmem>>, vector<8x1xf32>,
      %cst_39 = arith.constant -1.000000e+30 : f32
      %68 = vector.broadcast %cst_39 : f32 to vector<8x1xf32>
      %c0_40 = arith.constant 0 : index
      %c0_41 = arith.constant 0 : index
      %69 = vector.load %arg7[%c0_40, %c0_41] : memref<8x1xf32, #tpu.memory_space<vmem>>, vector<8x1xf32>
      tpu.vector_store %arg7[%c0_40, %c0_41], %68 {strides = array<i32>} : memref<8x1xf32, #tpu.memory_space<vmem>>, vector<8x1xf32>,
      %cst_42 = arith.constant 0.000000e+00 : f32
      %70 = vector.broadcast %cst_42 : f32 to vector<8x1xf32>
      %c0_43 = arith.constant 0 : index
      %c0_44 = arith.constant 0 : index
      %71 = vector.load %arg8[%c0_43, %c0_44] : memref<8x1xf32, #tpu.memory_space<vmem>>, vector<8x1xf32>
      tpu.vector_store %arg8[%c0_43, %c0_44], %70 {strides = array<i32>} : memref<8x1xf32, #tpu.memory_space<vmem>>, vector<8x1xf32>,
      %cst_45 = arith.constant 0.000000e+00 : f32
      %72 = vector.broadcast %cst_45 : f32 to vector<8x1xf32>
      %c0_46 = arith.constant 0 : index
      %c0_47 = arith.constant 0 : index
      %73 = vector.load %arg9[%c0_46, %c0_47] : memref<8x1xf32, #tpu.memory_space<vmem>>, vector<8x1xf32>
      tpu.vector_store %arg9[%c0_46, %c0_47], %72 {strides = array<i32>} : memref<8x1xf32, #tpu.memory_space<vmem>>, vector<8x1xf32>,
    } else {
    }
    %c0 = arith.constant 0 : index
    %c0_1 = arith.constant 0 : index
    %3 = vector.load %arg2[%c0, %c0_1] : memref<8x32xf32, #tpu.memory_space<vmem>>, vector<8x32xf32>
    %c0_2 = arith.constant 0 : index
    %c0_3 = arith.constant 0 : index
    %4 = vector.load %arg3[%c0_2, %c0_3] : memref<32x128xf32, #tpu.memory_space<vmem>>, vector<32x128xf32>
    %c0_4 = arith.constant 0 : index
    %c0_5 = arith.constant 0 : index
    %5 = vector.load %arg4[%c0_4, %c0_5] : memref<8x1xi32, #tpu.memory_space<vmem>>, vector<8x1xi32>
    %6 = arith.mulf %4, %4 : vector<32x128xf32>
    %cst = arith.constant dense<0.000000e+00> : vector<128xf32>
    %7 = vector.multi_reduction <add>, %6, %cst [0] : vector<32x128xf32> to vector<128xf32>
    %8 = vector.shape_cast %7 : vector<128xf32> to vector<1x128xf32>
    %cst_6 = arith.constant 1.000000e-24 : f32
    %9 = vector.broadcast %cst_6 : f32 to vector<1x128xf32>
    %10 = arith.maximumf %8, %9 : vector<1x128xf32>
    %11 = math.rsqrt %10 : vector<1x128xf32>
    %cst_7 = arith.constant dense<0.000000e+00> : vector<8x128xf32>
    %12 = tpu.matmul %3, %4, %cst_7 {dimension_numbers = #tpu.dot_dimension_numbers<[1], [0], [0], [1], [0, 0, 1, 1], [], []>} : vector<8x32xf32>, vector<32x128xf32>, vector<8x128xf32> -> vector<8x128xf32>
    %c0_8 = arith.constant 0 : index
    %c0_9 = arith.constant 0 : index
    %13 = vector.load %arg6[%c0_8, %c0_9] : memref<8x1xf32, #tpu.memory_space<vmem>>, vector<8x1xf32>
    %14 = vector.broadcast %13 : vector<8x1xf32> to vector<8x128xf32>
    %15 = arith.mulf %12, %14 : vector<8x128xf32>
    %16 = vector.broadcast %11 : vector<1x128xf32> to vector<8x128xf32>
    %17 = arith.mulf %15, %16 : vector<8x128xf32>
    %c128_i32 = arith.constant 128 : i32
    %18 = arith.muli %arg1, %c128_i32 : i32
    %19 = tpu.iota {dimensions = array<i32: 1>} : vector<8x128xi32>
    %20 = vector.broadcast %18 : i32 to vector<8x128xi32>
    %21 = arith.addi %20, %19 : vector<8x128xi32>
    %22 = vector.broadcast %5 : vector<8x1xi32> to vector<8x128xi32>
    %23 = arith.cmpi eq, %21, %22 : vector<8x128xi32>
    %cst_10 = arith.constant 3.000000e-01 : f32
    %24 = vector.broadcast %cst_10 : f32 to vector<8x128xf32>
    %25 = arith.subf %17, %24 : vector<8x128xf32>
    %26 = arith.select %23, %25, %17 : vector<8x128xi1>, vector<8x128xf32>
    %cst_11 = arith.constant 1.500000e+01 : f32
    %27 = vector.broadcast %cst_11 : f32 to vector<8x128xf32>
    %28 = arith.mulf %27, %26 : vector<8x128xf32>
    %c10_i32 = arith.constant 10 : i32
    %29 = vector.broadcast %c10_i32 : i32 to vector<8x128xi32>
    %30 = arith.cmpi slt, %21, %29 : vector<8x128xi32>
    %cst_12 = arith.constant -1.000000e+30 : f32
    %31 = vector.broadcast %cst_12 : f32 to vector<8x128xf32>
    %32 = arith.select %30, %28, %31 : vector<8x128xi1>, vector<8x128xf32>
    %c0_13 = arith.constant 0 : index
    %c0_14 = arith.constant 0 : index
    %33 = vector.load %arg7[%c0_13, %c0_14] : memref<8x1xf32, #tpu.memory_space<vmem>>, vector<8x1xf32>
    %cst_15 = arith.constant dense<0xFF800000> : vector<8xf32>
    %34 = vector.multi_reduction <maximumf>, %32, %cst_15 [1] : vector<8x128xf32> to vector<8xf32>
    %35 = vector.shape_cast %34 : vector<8xf32> to vector<8x1xf32>
    %36 = arith.maximumf %33, %35 : vector<8x1xf32>
    %c0_16 = arith.constant 0 : index
    %c0_17 = arith.constant 0 : index
    %37 = vector.load %arg7[%c0_16, %c0_17] : memref<8x1xf32, #tpu.memory_space<vmem>>, vector<8x1xf32>
    %38 = arith.subf %37, %36 : vector<8x1xf32>
    %39 = math.exp %38 : vector<8x1xf32>
    %c0_18 = arith.constant 0 : index
    %c0_19 = arith.constant 0 : index
    %40 = vector.load %arg8[%c0_18, %c0_19] : memref<8x1xf32, #tpu.memory_space<vmem>>, vector<8x1xf32>
    %41 = arith.mulf %39, %40 : vector<8x1xf32>
    %42 = vector.broadcast %36 : vector<8x1xf32> to vector<8x128xf32>
    %43 = arith.subf %32, %42 : vector<8x128xf32>
    %44 = math.exp %43 : vector<8x128xf32>
    %cst_20 = arith.constant dense<0.000000e+00> : vector<8xf32>
    %45 = vector.multi_reduction <add>, %44, %cst_20 [1] : vector<8x128xf32> to vector<8xf32>
    %46 = vector.shape_cast %45 : vector<8xf32> to vector<8x1xf32>
    %47 = arith.addf %41, %46 : vector<8x1xf32>
    %c0_21 = arith.constant 0 : index
    %c0_22 = arith.constant 0 : index
    %48 = vector.load %arg8[%c0_21, %c0_22] : memref<8x1xf32, #tpu.memory_space<vmem>>, vector<8x1xf32>
    tpu.vector_store %arg8[%c0_21, %c0_22], %47 {strides = array<i32>} : memref<8x1xf32, #tpu.memory_space<vmem>>, vector<8x1xf32>,
    %c0_23 = arith.constant 0 : index
    %c0_24 = arith.constant 0 : index
    %49 = vector.load %arg7[%c0_23, %c0_24] : memref<8x1xf32, #tpu.memory_space<vmem>>, vector<8x1xf32>
    tpu.vector_store %arg7[%c0_23, %c0_24], %36 {strides = array<i32>} : memref<8x1xf32, #tpu.memory_space<vmem>>, vector<8x1xf32>,
    %c0_25 = arith.constant 0 : index
    %c0_26 = arith.constant 0 : index
    %50 = vector.load %arg9[%c0_25, %c0_26] : memref<8x1xf32, #tpu.memory_space<vmem>>, vector<8x1xf32>
    %cst_27 = arith.constant 0.000000e+00 : f32
    %51 = vector.broadcast %cst_27 : f32 to vector<8x128xf32>
    %52 = arith.select %23, %32, %51 : vector<8x128xi1>, vector<8x128xf32>
    %cst_28 = arith.constant dense<0.000000e+00> : vector<8xf32>
    %53 = vector.multi_reduction <add>, %52, %cst_28 [1] : vector<8x128xf32> to vector<8xf32>
    %54 = vector.shape_cast %53 : vector<8xf32> to vector<8x1xf32>
    %55 = arith.addf %50, %54 : vector<8x1xf32>
    %c0_29 = arith.constant 0 : index
    %c0_30 = arith.constant 0 : index
    %56 = vector.load %arg9[%c0_29, %c0_30] : memref<8x1xf32, #tpu.memory_space<vmem>>, vector<8x1xf32>
    tpu.vector_store %arg9[%c0_29, %c0_30], %55 {strides = array<i32>} : memref<8x1xf32, #tpu.memory_space<vmem>>, vector<8x1xf32>,
    %c0_i32_31 = arith.constant 0 : i32
    %57 = arith.cmpi eq, %arg1, %c0_i32_31 : i32
    %58 = arith.extui %57 : i1 to i32
    %c0_i32_32 = arith.constant 0 : i32
    %59 = arith.cmpi ne, %58, %c0_i32_32 : i32
    scf.if %59 {
      %c0_33 = arith.constant 0 : index
      %c0_34 = arith.constant 0 : index
      %60 = vector.load %arg7[%c0_33, %c0_34] : memref<8x1xf32, #tpu.memory_space<vmem>>, vector<8x1xf32>
      %c0_35 = arith.constant 0 : index
      %c0_36 = arith.constant 0 : index
      %61 = vector.load %arg8[%c0_35, %c0_36] : memref<8x1xf32, #tpu.memory_space<vmem>>, vector<8x1xf32>
      %62 = math.log %61 : vector<8x1xf32>
      %63 = arith.addf %60, %62 : vector<8x1xf32>
      %c0_37 = arith.constant 0 : index
      %c0_38 = arith.constant 0 : index
      %64 = vector.load %arg9[%c0_37, %c0_38] : memref<8x1xf32, #tpu.memory_space<vmem>>, vector<8x1xf32>
      %65 = arith.subf %63, %64 : vector<8x1xf32>
      %c0_39 = arith.constant 0 : index
      %c0_40 = arith.constant 0 : index
      %66 = vector.load %arg5[%c0_39, %c0_40] : memref<8x1xf32, #tpu.memory_space<vmem>>, vector<8x1xf32>
      tpu.vector_store %arg5[%c0_39, %c0_40], %65 {strides = array<i32>} : memref<8x1xf32, #tpu.memory_space<vmem>>, vector<8x1xf32>,
    } else {
    }
    return
  }
  func.func @transform_0(%arg0: i32, %arg1: i32) -> (i32, i32) {
    %c0_i32 = arith.constant 0 : i32
    %c0_i32_0 = arith.constant 0 : i32
    return %arg0, %c0_i32 : i32, i32
  }
  func.func @transform_1(%arg0: i32, %arg1: i32) -> (i32, i32) {
    %c0_i32 = arith.constant 0 : i32
    %c0_i32_0 = arith.constant 0 : i32
    return %c0_i32, %arg1 : i32, i32
  }
  func.func @transform_2(%arg0: i32, %arg1: i32) -> (i32, i32) {
    %c0_i32 = arith.constant 0 : i32
    %c0_i32_0 = arith.constant 0 : i32
    return %arg0, %c0_i32 : i32, i32
  }
  func.func @transform_3(%arg0: i32, %arg1: i32) -> (i32, i32) {
    %c0_i32 = arith.constant 0 : i32
    %c0_i32_0 = arith.constant 0 : i32
    return %arg0, %c0_i32 : i32, i32
  }
}

</mosaic_0001>

<llo_original>
// kernel: tpu_custom_call.1
$region0: #{tpu_custom_call.1}
  #allocation0 [shape = 'u32[]', space=smem, size = 0x4, offset = 0x4, fixed_abs, tag = 'smem constant byte address 0x4 - core index']
  #allocation1 [shape = 'u32[144,128]{1,0:T(1,128)}', space=vmem, size = 0x12000, scoped, tag = 'internal scratch']
  #allocation2 [shape = 'f32[8,1]{1,0:T(8,128)}', space=vmem, size = 0x1000, scoped, tag = 'scratch operand']
  #allocation3 [shape = 'f32[8,1]{1,0:T(8,128)}', space=vmem, size = 0x1000, scoped, tag = 'scratch operand']
  #allocation4 [shape = 'f32[8,1]{1,0:T(8,128)}', space=vmem, size = 0x1000, scoped, tag = 'scratch operand']
  #allocation5 [shape = 'f32[8,1]{1,0:T(8,128)}', space=vmem, size = 0x1000, scoped, tag = 'scratch operand']
  %s0 = inlined_call_operand.vmem [shape: f32[8,32], index: 0, kind: input, shape index: {}]
  %s1 = inlined_call_operand.hbm [shape: f32[32,128], index: 1, kind: input, shape index: {}]
  %s2 = inlined_call_operand.vmem [shape: s32[8,1], index: 2, kind: input, shape index: {}]
  %s3 = inlined_call_operand.vmem [shape: f32[8,1], index: 3, kind: output, shape index: {}]
  %s4 = sld [smem:[#allocation0]]
  $region34: #{tpu_custom_call.1} parent=0
    _
  %s6 = ssub.s32 1, %s4
  %s7 = scalar_select 0, %s6, %s4
  $region1: #{tpu_custom_call.1} parent=0
    #allocation6 [shape = 'u8[16384]{0}', space=vmem, size = 0x4000, scoped, tag = 'input window, operand 1, single buffered']
    #allocation7 [shape = 's32[1]{0}', space=sflag, size = 0x4, scoped, tag = 'scoped memory for tpu_custom_call.1']
    %8 = vsyncpa [#allocation7], 0
    // Predicated region
    $region2: #{tpu_custom_call.1} parent=1 // pred_check
      _
    $region3: #{tpu_custom_call.1} parent=1 // pred_check_branch
      %10 = sbr.rel (0) target = $region5
    $region4: #{tpu_custom_call.1} parent=1 // pred_region
      _
    $region5: #{tpu_custom_call.1} parent=1 // pred_fallthru
      _
    // Predicated region
    $region6: #{tpu_custom_call.1} parent=1 // pred_check
      _
    $region7: #{tpu_custom_call.1} parent=1 // pred_check_branch
      %12 = sbr.rel (0) target = $region9
    $region8: #{tpu_custom_call.1} parent=1 // pred_region
      %s14 = ssub.s32 512, 512
      %15 = vsyncadd [#allocation7], %s14
      %s16 = sshll.u32 [#allocation6], 4
      %s17 = int_to_ptr.vmem [resolvable:$true] %s16
      %22 = dma.hbm_to_vmem [thread:$0]  %s1, 512, %s17, [#allocation7], 128, 128, 8
    $region9: #{tpu_custom_call.1} parent=1 // pred_fallthru
      _
    // Predicated region
    $region10: #{tpu_custom_call.1} parent=1 // pred_check
      _
    $region11: #{tpu_custom_call.1} parent=1 // pred_check_branch
      %24 = sbr.rel (0) target = $region13
    $region12: #{tpu_custom_call.1} parent=1 // pred_region
      _
    $region13: #{tpu_custom_call.1} parent=1 // pred_fallthru
      _
    // Predicated region
    $region14: #{tpu_custom_call.1} parent=1 // pred_check
      _
    $region15: #{tpu_custom_call.1} parent=1 // pred_check_branch
      %26 = sbr.rel (0) target = $region17
    $region16: #{tpu_custom_call.1} parent=1 // pred_region
      %27 = dma.done [#allocation7], 512
    $region17: #{tpu_custom_call.1} parent=1 // pred_fallthru
      _
    %p28 = scmp.eq.s32.totalorder 0, 0
    // Predicated region
    $region18: #{tpu_custom_call.1} parent=1 // pred_check
      %p29 = pneg %p28
    $region19: #{tpu_custom_call.1} parent=1 // pred_check_branch
      %31 = sbr.rel (%p29) target = $region21
    $region20: #{tpu_custom_call.1} parent=1 // pred_region
      %v32 = vld [vmem:[%s0] sm:$0xff]
      %v33 = vmul.f32 %v32, %v32
      %vm34 = vcmask 261120
      %v35 = vsel %vm34, %v33, 0.0
      %36 = vadd.xlane.f32.xlu0 %v35
      %v37 = vpop.xlane.xlu0 %36
      %v38 = vmax.f32 %v37, 1e-24
      %v39 = vrsqrt.pop %v38
      %vm40 = vcmask 7168
      %41 = vst.msk [vmem:[#allocation2] sm:$0xff] %vm40, %v39
      %42 = vst.msk [vmem:[#allocation3] sm:$0xff] %vm40, -1e+30
      %43 = vst.msk [vmem:[#allocation4] sm:$0xff] %vm40, 0.0
      %44 = vst.msk [vmem:[#allocation5] sm:$0xff] %vm40, 0.0
    $region21: #{tpu_custom_call.1} parent=1 // pred_fallthru
      _
    %v45 = vld [vmem:[%s0] sm:$0xff]
    %v46 = vld [vmem:[#allocation6] sm:$0xff]
    %v47 = vld [vmem:[#allocation6 + $0x8] sm:$0xff]
    %v48 = vld [vmem:[#allocation6 + $0x10] sm:$0xff]
    %v49 = vld [vmem:[#allocation6 + $0x18] sm:$0xff]
    %v50 = vld [vmem:[%s2] sm:$0xff]
    %v51 = vmul.f32 %v46, %v46
    %v52 = vmul.f32 %v47, %v47
    %v53 = vmul.f32 %v48, %v48
    %v54 = vmul.f32 %v49, %v49
    %v55 = vadd.f32 %v51, %v52
    %v56 = vadd.f32 %v55, %v53
    %v57 = vadd.f32 %v56, %v54
    %v58 = vrot.slane %v57, 4
    %v59 = vadd.f32 %v57, %v58
    %v60 = vrot.slane %v59, 2
    %v61 = vadd.f32 %v59, %v60
    %v62 = vrot.slane %v61, 1
    %v63 = vadd.f32 %v61, %v62
    %v64 = vmax.f32 %v63, 1e-24
    %v65 = vrsqrt.pop %v64
    %vm66 = vcmask 261120
    %v68 = vsel %vm66, %v45, 0
    %70 = vmatprep.subr.mxu0 0.0
    %71 = vmatpush1.msra.mxu0 %v46
    %72 = vmatprep.subr.mxu0 0.0
    %73 = vmatpush1.msra.mxu0 %v47
    %74 = vmatprep.subr.mxu0 0.0
    %75 = vmatpush1.msra.mxu0 %v48
    %76 = vmatprep.subr.mxu0 0.0
    %77 = vmatpush1.msra.mxu0 %v49
    %78 = vmatprep.subr.mxu0 0.0
    %79 = vmatpush1.msra.mxu0 0.0
    %80 = vmatprep.subr.mxu0 0.0
    %81 = vmatpush1.msra.mxu0 0.0
    %82 = vmatprep.subr.mxu0 0.0
    %83 = vmatpush1.msra.mxu0 0.0
    %84 = vmatprep.subr.mxu0 0.0
    %85 = vmatpush1.msra.mxu0 0.0
    %86 = vmatprep.subr.mxu0 0.0
    %87 = vmatpush1.msra.mxu0 0.0
    %88 = vmatprep.subr.mxu0 0.0
    %89 = vmatpush1.msra.mxu0 0.0
    %90 = vmatprep.subr.mxu0 0.0
    %91 = vmatpush1.msra.mxu0 0.0
    %92 = vmatprep.subr.mxu0 0.0
    %93 = vmatpush1.msra.mxu0 0.0
    %94 = vmatprep.subr.mxu0 0.0
    %95 = vmatpush1.msra.mxu0 0.0
    %96 = vmatprep.subr.mxu0 0.0
    %97 = vmatpush1.msra.mxu0 0.0
    %98 = vmatprep.subr.mxu0 0.0
    %99 = vmatpush1.msra.mxu0 0.0
    %100 = vmatprep.subr.mxu0 0.0
    %101 = vmatpush1.msra.mxu0 0.0
    %102 = vmatprep.subr.mxu0 0.0
    %103 = vmatpush1.msra.mxu0 0.0
    %104 = vmatprep.subr.mxu0 0.0
    %105 = vmatpush1.msra.mxu0 0.0
    %106 = vmatprep.subr.mxu0 0.0
    %107 = vmatpush1.msra.mxu0 0.0
    %108 = vmatprep.subr.mxu0 0.0
    %109 = vmatpush1.msra.mxu0 0.0
    %110 = vmatprep.subr.mxu0 0.0
    %111 = vmatpush1.msra.mxu0 0.0
    %112 = vmatprep.subr.mxu0 0.0
    %113 = vmatpush1.msra.mxu0 0.0
    %114 = vmatprep.subr.mxu0 0.0
    %115 = vmatpush1.msra.mxu0 0.0
    %116 = vmatprep.subr.mxu0 0.0
    %117 = vmatpush1.msra.mxu0 0.0
    %118 = vmatprep.subr.mxu0 0.0
    %119 = vmatpush1.msra.mxu0 0.0
    %120 = vmatprep.subr.mxu0 0.0
    %121 = vmatpush1.msra.mxu0 0.0
    %122 = vmatprep.subr.mxu0 0.0
    %123 = vmatpush1.msra.mxu0 0.0
    %124 = vmatprep.subr.mxu0 0.0
    %125 = vmatpush1.msra.mxu0 0.0
    %126 = vmatprep.subr.mxu0 0.0
    %127 = vmatpush1.msra.mxu0 0.0
    %128 = vmatprep.subr.mxu0 0.0
    %129 = vmatpush1.msra.mxu0 0.0
    %130 = vmatprep.subr.mxu0 0.0
    %131 = vmatpush1.msra.mxu0 0.0
    %132 = vmatprep.subr.mxu0 0.0
    %133 = vmatpush1.msra.mxu0 0.0
    %134 = vmatprep.mubr.f32.mxu0 0.0
    %135 = vmatmul.mubr.f32.gmra.mrb[0].mxu0 %v68
    %v136 = vpop.f32.mrb[0].mxu0
    %v137 = vadd.f32 0.0, %v136
    %v138 = vpop.f32.mrb[0].mxu0
    %139 = vdwg.mxu0
    %v140 = vld [vmem:[#allocation2] sm:$0xff]
    %142 = vset.pattern.permute.xlu0 0
    %143 = vperm.xlu0 %142, %v140
    %v144 = vpop.permute.xlu0 %143
    %v146 = vmul.f32 %v137, %v144
    %v147 = vmul.f32 %v146, %v65
    %s148 = smul.u32 0, 128
    %v149 = vlaneseq
    %v150 = vand.u32 %v149, 127
    %v151 = vstv %s148
    %v152 = vadd.s32 %v151, %v150
    %153 = vset.pattern.permute.xlu0 0
    %154 = vperm.xlu0 %153, %v50
    %v155 = vpop.permute.xlu0 %154
    %vm156 = vcmp.eq.s32.totalorder %v152, %v155
    %v157 = vsub.f32 %v147, 0.3
    %v158 = vsel %vm156, %v157, %v147
    %v159 = vmul.f32 %v158, 15.0
    %vm160 = vcmp.lt.s32.totalorder %v152, 10
    %v161 = vsel %vm160, %v159, -1e+30
    %v162 = vld [vmem:[#allocation3] sm:$0xff]
    %163 = vmax.xlane.f32.xlu0 %v161
    %v164 = vpop.xlane.xlu0 %163
    %v165 = vmax.f32 %v162, %v164
    %v166 = vsub.f32 %v162, %v165
    %v167 = vmul.f32 %v166, 1.442695
    %v168 = vpow.pop %v167
    %v169 = vld [vmem:[#allocation4] sm:$0xff]
    %v170 = vmul.f32 %v168, %v169
    %172 = vset.pattern.permute.xlu0 0
    %173 = vperm.xlu0 %172, %v165
    %v174 = vpop.permute.xlu0 %173
    %v176 = vsub.f32 %v161, %v174
    %v177 = vmul.f32 %v176, 1.442695
    %v178 = vpow.pop %v177
    %179 = vadd.xlane.f32.xlu0 %v178
    %v180 = vpop.xlane.xlu0 %179
    %v181 = vadd.f32 %v170, %v180
    %vm182 = vcmask 7168
    %183 = vst.msk [vmem:[#allocation4] sm:$0xff] %vm182, %v181
    %184 = vst.msk [vmem:[#allocation3] sm:$0xff] %vm182, %v165
    %v185 = vld [vmem:[#allocation5] sm:$0xff]
    %v186 = vsel %vm156, %v161, 0.0
    %187 = vadd.xlane.f32.xlu0 %v186
    %v188 = vpop.xlane.xlu0 %187
    %v189 = vadd.f32 %v185, %v188
    %190 = vst.msk [vmem:[#allocation5] sm:$0xff] %vm182, %v189
    // Predicated region
    $region22: #{tpu_custom_call.1} parent=1 // pred_check
      %p191 = pneg %p28
    $region23: #{tpu_custom_call.1} parent=1 // pred_check_branch
      %193 = sbr.rel (%p191) target = $region25
    $region24: #{tpu_custom_call.1} parent=1 // pred_region
      %v194 = vld [vmem:[#allocation3] sm:$0xff]
      %v195 = vld [vmem:[#allocation4] sm:$0xff]
      %v196 = vlog2.pop %v195
      %v197 = vmul.f32 %v196, 0.6931472
      %v198 = vadd.f32 %v194, %v197
      %v199 = vld [vmem:[#allocation5] sm:$0xff]
      %v200 = vsub.f32 %v198, %v199
      %201 = vst.msk [vmem:[%s3] sm:$0xff] %vm182, %v200
    $region25: #{tpu_custom_call.1} parent=1 // pred_fallthru
      _
    // Predicated region
    $region26: #{tpu_custom_call.1} parent=1 // pred_check
      _
    $region27: #{tpu_custom_call.1} parent=1 // pred_check_branch
      %203 = sbr.rel (0) target = $region29
    $region28: #{tpu_custom_call.1} parent=1 // pred_region
      _
    $region29: #{tpu_custom_call.1} parent=1 // pred_fallthru
      _
    // Predicated region
    $region30: #{tpu_custom_call.1} parent=1 // pred_check
      _
    $region31: #{tpu_custom_call.1} parent=1 // pred_check_branch
      %205 = sbr.rel (0) target = $region33
    $region32: #{tpu_custom_call.1} parent=1 // pred_region
      _
    $region33: #{tpu_custom_call.1} parent=1 // pred_fallthru
      _
    %206 = vsyncpa [#allocation7], 1

</llo_original>
